<compile_context>
chip_gen: v6e
topology: v6e:2x2x1
jax: 0.10.0
libtpu: 0.0.40
codegen_flags: <defaults>
</compile_context>

<pallas_src>
import jax
import jax.numpy as jnp
from jax import lax
from jax.experimental import pallas as pl
from jax.experimental.pallas import tpu as pltpu

IN_FEATURES = 41
LAYER_DIMS = [(41, 16), (16, 16), (16, 8), (8, 2)]  # (fan_in, fan_out)


def yesno_kernel(x_ref,
                 w1_ref, b1_ref,
                 w2_ref, b2_ref,
                 w3_ref, b3_ref,
                 w4_ref, b4_ref,
                 o_ref):
    """Fused MLP forward.

    x_ref:  [TB, 41]  native batch-major tile straight from HBM
    wK_ref: [out, in] PyTorch weight layout (VMEM-resident)
    bK_ref: [out, 1]
    o_ref:  [2, TB]   lane-dense class probabilities (batch on lanes)
    """
    # Layer 1 fuses the layout change into the matmul: contract the feature
    # axis of both W1 [16,41] and x [TB,41] -> [16, TB] batch-on-lanes.
    h = lax.dot_general(
        w1_ref[...], x_ref[...],
        dimension_numbers=(((1,), (1,)), ((), ())),
        preferred_element_type=jnp.float32)
    h = jnp.maximum(h + b1_ref[...], 0.0)      # [16, TB]

    def linear_relu(w_ref, b_ref, h):
        y = jnp.dot(w_ref[...], h, preferred_element_type=jnp.float32)
        return jnp.maximum(y + b_ref[...], 0.0)

    h = linear_relu(w2_ref, b2_ref, h)         # [16, TB]
    h = linear_relu(w3_ref, b3_ref, h)         # [8,  TB]
    h = linear_relu(w4_ref, b4_ref, h)         # [2,  TB]

    # 2-class softmax: numerically stable, purely elementwise per batch column
    # (no cross-lane reduction), emitted as ONE full-tile lane-dense store.
    h0 = h[0:1, :]
    h1 = h[1:2, :]
    m = jnp.maximum(h0, h1)
    e0 = jnp.exp(h0 - m)
    e1 = jnp.exp(h1 - m)
    inv = pl.reciprocal(e0 + e1)               # exact; EUP/VPU have slack
    o_ref[...] = jnp.concatenate([e0 * inv, e1 * inv], axis=0).astype(o_ref.dtype)


def _choose_batch_tile(B, tb_max):
    """Batch tile (multiple of 128) such that:
      * each tile is <= tb_max columns,
      * the grid has >= 2 steps whenever B > 128 (v7x megacore sharding),
      * ragged-edge waste is < one lane-group per tile (handled by masking)."""
    n128 = pl.cdiv(B, 128)                     # 128-lane groups needed
    max_k = max(tb_max // 128, 1)              # lane-group cap per tile
    n_tiles = max(pl.cdiv(n128, max_k), min(2, n128))
    k = pl.cdiv(n128, n_tiles)                 # lane-groups per tile
    return k * 128


def yesno_forward(x, params, *, tb_max=16384):
    """x: [B, 41] float32 (native layout; no host-side transpose or pad).
    Returns softmax probabilities [B, 2]."""
    B, F = x.shape
    assert F == IN_FEATURES

    tb = _choose_batch_tile(B, tb_max)
    grid = (pl.cdiv(B, tb),)

    weight_args = []
    weight_specs = []
    for i in range(1, 5):
        w = params[f"w{i}"]   # [out, in]
        b = params[f"b{i}"]   # [out, 1]
        weight_args += [w, b]
        weight_specs += [
            pl.BlockSpec(w.shape, lambda i: (0, 0)),   # resident across grid
            pl.BlockSpec(b.shape, lambda i: (0, 0)),
        ]

    out_t = pl.pallas_call(
        yesno_kernel,
        out_shape=jax.ShapeDtypeStruct((2, B), jnp.float32),
        grid=grid,
        in_specs=[pl.BlockSpec((tb, F), lambda i: (i, 0))] + weight_specs,
        out_specs=pl.BlockSpec((2, tb), lambda i: (0, i)),
        compiler_params=pltpu.CompilerParams(
            dimension_semantics=("parallel",),
            vmem_limit_bytes=32 * 1024 * 1024,
        ),
    )(x, *weight_args)

    # Tiny [2,B] -> [B,2] transpose (8 B/sample; negligible vs 164 B/sample in).
    return out_t.T


def init_params(key):
    """Deterministic init mimicking nn.Linear default (uniform +-1/sqrt(fan_in)).
    Weights stored PyTorch-style as [out, in]; biases as [out, 1]."""
    params = {}
    for i, (fan_in, fan_out) in enumerate(LAYER_DIMS, start=1):
        key, kw, kb = jax.random.split(key, 3)
        bound = 1.0 / jnp.sqrt(jnp.float32(fan_in))
        params[f"w{i}"] = jax.random.uniform(
            kw, (fan_out, fan_in), jnp.float32, minval=-bound, maxval=bound)
        params[f"b{i}"] = jax.random.uniform(
            kb, (fan_out, 1), jnp.float32, minval=-bound, maxval=bound)
    return params


def reference_forward(x, params):
    """Pure-JAX reference for correctness checking."""
    h = x
    for i in range(1, 5):
        w = params[f"w{i}"]          # [out, in]
        b = params[f"b{i}"][:, 0]    # [out]
        h = jnp.maximum(h @ w.T + b, 0.0)
    return jax.nn.softmax(h, axis=-1)


if __name__ == "__main__":
    key = jax.random.PRNGKey(0)
    kx, kp = jax.random.split(key)
    params = init_params(kp)

    # Small canonical case (single tile).
    B = 8
    x = jax.random.normal(kx, (B, IN_FEATURES), jnp.float32)
    out = jax.block_until_ready(yesno_forward(x, params))
    ref = reference_forward(x, params)
    assert out.shape == (B, 2)
    assert jnp.allclose(out, ref, atol=1e-5, rtol=1e-5), "mismatch vs reference (B=8)"

    # Multi-tile case with a ragged last tile (exercises masked boundary path
    # and the >=2-grid-step megacore split).
    B2 = 300
    x2 = jax.random.normal(jax.random.PRNGKey(1), (B2, IN_FEATURES), jnp.float32)
    out2 = jax.block_until_ready(yesno_forward(x2, params))
    ref2 = reference_forward(x2, params)
    assert out2.shape == (B2, 2)
    assert jnp.allclose(out2, ref2, atol=1e-5, rtol=1e-5), "mismatch vs reference (B=300)"

    print("KERNEL_OK")
</pallas_src>

<mosaic_0001>
module attributes {stable_mosaic.version = 11 : i64} {
  func.func @yesno_kernel(%arg0: i32, %arg1: memref<128x41xf32, #tpu.memory_space<vmem>>, %arg2: memref<16x41xf32, #tpu.memory_space<vmem>>, %arg3: memref<16x1xf32, #tpu.memory_space<vmem>>, %arg4: memref<16x16xf32, #tpu.memory_space<vmem>>, %arg5: memref<16x1xf32, #tpu.memory_space<vmem>>, %arg6: memref<8x16xf32, #tpu.memory_space<vmem>>, %arg7: memref<8x1xf32, #tpu.memory_space<vmem>>, %arg8: memref<2x8xf32, #tpu.memory_space<vmem>>, %arg9: memref<2x1xf32, #tpu.memory_space<vmem>>, %arg10: memref<2x128xf32, #tpu.memory_space<vmem>>) attributes {dimension_semantics = [#tpu.dimension_semantics<parallel>], iteration_bounds = array<i64: 1>, scalar_prefetch = 0 : i64, scratch_operands = 0 : i64, tpu.core_type = #tpu.core_type<tc>, window_params = [{transform_indices = @transform_0, window_bounds = array<i64: 128, 41>}, {pipeline_mode = #tpu.pipeline_mode<synchronous>, transform_indices = @transform_1, window_bounds = array<i64: 16, 41>}, {pipeline_mode = #tpu.pipeline_mode<synchronous>, transform_indices = @transform_2, window_bounds = array<i64: 16, 1>}, {pipeline_mode = #tpu.pipeline_mode<synchronous>, transform_indices = @transform_3, window_bounds = array<i64: 16, 16>}, {pipeline_mode = #tpu.pipeline_mode<synchronous>, transform_indices = @transform_4, window_bounds = array<i64: 16, 1>}, {pipeline_mode = #tpu.pipeline_mode<synchronous>, transform_indices = @transform_5, window_bounds = array<i64: 8, 16>}, {pipeline_mode = #tpu.pipeline_mode<synchronous>, transform_indices = @transform_6, window_bounds = array<i64: 8, 1>}, {pipeline_mode = #tpu.pipeline_mode<synchronous>, transform_indices = @transform_7, window_bounds = array<i64: 2, 8>}, {pipeline_mode = #tpu.pipeline_mode<synchronous>, transform_indices = @transform_8, window_bounds = array<i64: 2, 1>}, {transform_indices = @transform_9, window_bounds = array<i64: 2, 128>}]} {
    %c0 = arith.constant 0 : index
    %c0_0 = arith.constant 0 : index
    %0 = vector.load %arg2[%c0, %c0_0] : memref<16x41xf32, #tpu.memory_space<vmem>>, vector<16x41xf32>
    %c0_1 = arith.constant 0 : index
    %c0_2 = arith.constant 0 : index
    %1 = vector.load %arg1[%c0_1, %c0_2] : memref<128x41xf32, #tpu.memory_space<vmem>>, vector<128x41xf32>
    %cst = arith.constant dense<0.000000e+00> : vector<16x128xf32>
    %2 = tpu.matmul %0, %1, %cst {dimension_numbers = #tpu.dot_dimension_numbers<[1], [1], [0], [0], [0, 0, 1, 0], [], []>} : vector<16x41xf32>, vector<128x41xf32>, vector<16x128xf32> -> vector<16x128xf32>
    %c0_3 = arith.constant 0 : index
    %c0_4 = arith.constant 0 : index
    %3 = vector.load %arg3[%c0_3, %c0_4] : memref<16x1xf32, #tpu.memory_space<vmem>>, vector<16x1xf32>
    %4 = vector.broadcast %3 : vector<16x1xf32> to vector<16x128xf32>
    %5 = arith.addf %2, %4 : vector<16x128xf32>
    %cst_5 = arith.constant 0.000000e+00 : f32
    %6 = vector.broadcast %cst_5 : f32 to vector<16x128xf32>
    %7 = arith.maximumf %5, %6 : vector<16x128xf32>
    %c0_6 = arith.constant 0 : index
    %c0_7 = arith.constant 0 : index
    %8 = vector.load %arg4[%c0_6, %c0_7] : memref<16x16xf32, #tpu.memory_space<vmem>>, vector<16x16xf32>
    %cst_8 = arith.constant dense<0.000000e+00> : vector<16x128xf32>
    %9 = tpu.matmul %8, %7, %cst_8 {dimension_numbers = #tpu.dot_dimension_numbers<[1], [0], [0], [1], [0, 0, 1, 1], [], []>} : vector<16x16xf32>, vector<16x128xf32>, vector<16x128xf32> -> vector<16x128xf32>
    %c0_9 = arith.constant 0 : index
    %c0_10 = arith.constant 0 : index
    %10 = vector.load %arg5[%c0_9, %c0_10] : memref<16x1xf32, #tpu.memory_space<vmem>>, vector<16x1xf32>
    %11 = vector.broadcast %10 : vector<16x1xf32> to vector<16x128xf32>
    %12 = arith.addf %9, %11 : vector<16x128xf32>
    %cst_11 = arith.constant 0.000000e+00 : f32
    %13 = vector.broadcast %cst_11 : f32 to vector<16x128xf32>
    %14 = arith.maximumf %12, %13 : vector<16x128xf32>
    %c0_12 = arith.constant 0 : index
    %c0_13 = arith.constant 0 : index
    %15 = vector.load %arg6[%c0_12, %c0_13] : memref<8x16xf32, #tpu.memory_space<vmem>>, vector<8x16xf32>
    %cst_14 = arith.constant dense<0.000000e+00> : vector<8x128xf32>
    %16 = tpu.matmul %15, %14, %cst_14 {dimension_numbers = #tpu.dot_dimension_numbers<[1], [0], [0], [1], [0, 0, 1, 1], [], []>} : vector<8x16xf32>, vector<16x128xf32>, vector<8x128xf32> -> vector<8x128xf32>
    %c0_15 = arith.constant 0 : index
    %c0_16 = arith.constant 0 : index
    %17 = vector.load %arg7[%c0_15, %c0_16] : memref<8x1xf32, #tpu.memory_space<vmem>>, vector<8x1xf32>
    %18 = vector.broadcast %17 : vector<8x1xf32> to vector<8x128xf32>
    %19 = arith.addf %16, %18 : vector<8x128xf32>
    %cst_17 = arith.constant 0.000000e+00 : f32
    %20 = vector.broadcast %cst_17 : f32 to vector<8x128xf32>
    %21 = arith.maximumf %19, %20 : vector<8x128xf32>
    %c0_18 = arith.constant 0 : index
    %c0_19 = arith.constant 0 : index
    %22 = vector.load %arg8[%c0_18, %c0_19] : memref<2x8xf32, #tpu.memory_space<vmem>>, vector<2x8xf32>
    %cst_20 = arith.constant dense<0.000000e+00> : vector<2x128xf32>
    %23 = tpu.matmul %22, %21, %cst_20 {dimension_numbers = #tpu.dot_dimension_numbers<[1], [0], [0], [1], [0, 0, 1, 1], [], []>} : vector<2x8xf32>, vector<8x128xf32>, vector<2x128xf32> -> vector<2x128xf32>
    %c0_21 = arith.constant 0 : index
    %c0_22 = arith.constant 0 : index
    %24 = vector.load %arg9[%c0_21, %c0_22] : memref<2x1xf32, #tpu.memory_space<vmem>>, vector<2x1xf32>
    %25 = vector.broadcast %24 : vector<2x1xf32> to vector<2x128xf32>
    %26 = arith.addf %23, %25 : vector<2x128xf32>
    %cst_23 = arith.constant 0.000000e+00 : f32
    %27 = vector.broadcast %cst_23 : f32 to vector<2x128xf32>
    %28 = arith.maximumf %26, %27 : vector<2x128xf32>
    %29 = vector.extract_strided_slice %28 {offsets = [0, 0], sizes = [1, 128], strides = [1, 1]} : vector<2x128xf32> to vector<1x128xf32>
    %30 = vector.extract_strided_slice %28 {offsets = [1, 0], sizes = [1, 128], strides = [1, 1]} : vector<2x128xf32> to vector<1x128xf32>
    %31 = arith.maximumf %29, %30 : vector<1x128xf32>
    %32 = arith.subf %29, %31 : vector<1x128xf32>
    %33 = math.exp %32 : vector<1x128xf32>
    %34 = arith.subf %30, %31 : vector<1x128xf32>
    %35 = math.exp %34 : vector<1x128xf32>
    %36 = arith.addf %33, %35 : vector<1x128xf32>
    %37 = tpu.reciprocal %36 : vector<1x128xf32> -> vector<1x128xf32>
    %38 = arith.mulf %33, %37 : vector<1x128xf32>
    %39 = arith.mulf %35, %37 : vector<1x128xf32>
    %40 = tpu.concatenate %38, %39 in 0 : vector<1x128xf32>, vector<1x128xf32> -> vector<2x128xf32>
    %c0_24 = arith.constant 0 : index
    %c0_25 = arith.constant 0 : index
    %41 = vector.load %arg10[%c0_24, %c0_25] : memref<2x128xf32, #tpu.memory_space<vmem>>, vector<2x128xf32>
    tpu.vector_store %arg10[%c0_24, %c0_25], %40 {strides = array<i32>} : memref<2x128xf32, #tpu.memory_space<vmem>>, vector<2x128xf32>,
    return
  }
  func.func @transform_0(%arg0: i32) -> (i32, i32) {
    %c0_i32 = arith.constant 0 : i32
    %c0_i32_0 = arith.constant 0 : i32
    return %arg0, %c0_i32 : i32, i32
  }
  func.func @transform_1(%arg0: i32) -> (i32, i32) {
    %c0_i32 = arith.constant 0 : i32
    %c0_i32_0 = arith.constant 0 : i32
    %c0_i32_1 = arith.constant 0 : i32
    return %c0_i32, %c0_i32_0 : i32, i32
  }
  func.func @transform_2(%arg0: i32) -> (i32, i32) {
    %c0_i32 = arith.constant 0 : i32
    %c0_i32_0 = arith.constant 0 : i32
    %c0_i32_1 = arith.constant 0 : i32
    return %c0_i32, %c0_i32_0 : i32, i32
  }
  func.func @transform_3(%arg0: i32) -> (i32, i32) {
    %c0_i32 = arith.constant 0 : i32
    %c0_i32_0 = arith.constant 0 : i32
    %c0_i32_1 = arith.constant 0 : i32
    return %c0_i32, %c0_i32_0 : i32, i32
  }
  func.func @transform_4(%arg0: i32) -> (i32, i32) {
    %c0_i32 = arith.constant 0 : i32
    %c0_i32_0 = arith.constant 0 : i32
    %c0_i32_1 = arith.constant 0 : i32
    return %c0_i32, %c0_i32_0 : i32, i32
  }
  func.func @transform_5(%arg0: i32) -> (i32, i32) {
    %c0_i32 = arith.constant 0 : i32
    %c0_i32_0 = arith.constant 0 : i32
    %c0_i32_1 = arith.constant 0 : i32
    return %c0_i32, %c0_i32_0 : i32, i32
  }
  func.func @transform_6(%arg0: i32) -> (i32, i32) {
    %c0_i32 = arith.constant 0 : i32
    %c0_i32_0 = arith.constant 0 : i32
    %c0_i32_1 = arith.constant 0 : i32
    return %c0_i32, %c0_i32_0 : i32, i32
  }
  func.func @transform_7(%arg0: i32) -> (i32, i32) {
    %c0_i32 = arith.constant 0 : i32
    %c0_i32_0 = arith.constant 0 : i32
    %c0_i32_1 = arith.constant 0 : i32
    return %c0_i32, %c0_i32_0 : i32, i32
  }
  func.func @transform_8(%arg0: i32) -> (i32, i32) {
    %c0_i32 = arith.constant 0 : i32
    %c0_i32_0 = arith.constant 0 : i32
    %c0_i32_1 = arith.constant 0 : i32
    return %c0_i32, %c0_i32_0 : i32, i32
  }
  func.func @transform_9(%arg0: i32) -> (i32, i32) {
    %c0_i32 = arith.constant 0 : i32
    %c0_i32_0 = arith.constant 0 : i32
    return %c0_i32, %arg0 : i32, i32
  }
}

</mosaic_0001>

<llo_original>
// kernel: tpu_custom_call.1
$region0: #{tpu_custom_call.1}
  #allocation0 [shape = 'u32[]', space=smem, size = 0x4, offset = 0x4, fixed_abs, tag = 'smem constant byte address 0x4 - core index']
  #allocation1 [shape = 'u32[144,128]{1,0:T(1,128)}', space=vmem, size = 0x12000, scoped, tag = 'internal scratch']
  %s0 = inlined_call_operand.vmem [shape: f32[8,41], index: 0, kind: input, shape index: {}]
  %s1 = inlined_call_operand.vmem [shape: f32[16,41], index: 1, kind: input, shape index: {}]
  %s2 = inlined_call_operand.vmem [shape: f32[16,1], index: 2, kind: input, shape index: {}]
  %s3 = inlined_call_operand.vmem [shape: f32[16,16], index: 3, kind: input, shape index: {}]
  %s4 = inlined_call_operand.vmem [shape: f32[16,1], index: 4, kind: input, shape index: {}]
  %s5 = inlined_call_operand.vmem [shape: f32[8,16], index: 5, kind: input, shape index: {}]
  %s6 = inlined_call_operand.vmem [shape: f32[8,1], index: 6, kind: input, shape index: {}]
  %s7 = inlined_call_operand.vmem [shape: f32[2,8], index: 7, kind: input, shape index: {}]
  %s8 = inlined_call_operand.vmem [shape: f32[2,1], index: 8, kind: input, shape index: {}]
  %s9 = inlined_call_operand.hbm [shape: f32[2,8], index: 9, kind: output, shape index: {}]
  %s10 = sld [smem:[#allocation0]]
  $region46: #{tpu_custom_call.1} parent=0
    _
  %s12 = ssub.s32 1, %s10
  %s13 = scalar_select 0, %s12, %s10
  $region1: #{tpu_custom_call.1} parent=0
    #allocation2 [shape = 'u8[1024]{0}', space=vmem, size = 0x400, scoped, tag = 'output window, operand 0, single buffered']
    #allocation3 [shape = 's32[1]{0}', space=sflag, size = 0x4, scoped, tag = 'scoped memory for tpu_custom_call.1']
    %14 = vsyncpa [#allocation3], 0
    // Predicated region
    $region2: #{tpu_custom_call.1} parent=1 // pred_check
      _
    $region3: #{tpu_custom_call.1} parent=1 // pred_check_branch
      %16 = sbr.rel (0) target = $region5
    $region4: #{tpu_custom_call.1} parent=1 // pred_region
      _
    $region5: #{tpu_custom_call.1} parent=1 // pred_fallthru
      _
    // Predicated region
    $region6: #{tpu_custom_call.1} parent=1 // pred_check
      _
    $region7: #{tpu_custom_call.1} parent=1 // pred_check_branch
      %18 = sbr.rel (0) target = $region9
    $region8: #{tpu_custom_call.1} parent=1 // pred_region
      _
    $region9: #{tpu_custom_call.1} parent=1 // pred_fallthru
      _
    // Predicated region
    $region10: #{tpu_custom_call.1} parent=1 // pred_check
      _
    $region11: #{tpu_custom_call.1} parent=1 // pred_check_branch
      %20 = sbr.rel (0) target = $region13
    $region12: #{tpu_custom_call.1} parent=1 // pred_region
      _
    $region13: #{tpu_custom_call.1} parent=1 // pred_fallthru
      _
    // Predicated region
    $region14: #{tpu_custom_call.1} parent=1 // pred_check
      _
    $region15: #{tpu_custom_call.1} parent=1 // pred_check_branch
      %22 = sbr.rel (0) target = $region17
    $region16: #{tpu_custom_call.1} parent=1 // pred_region
      _
    $region17: #{tpu_custom_call.1} parent=1 // pred_fallthru
      _
    // Predicated region
    $region18: #{tpu_custom_call.1} parent=1 // pred_check
      _
    $region19: #{tpu_custom_call.1} parent=1 // pred_check_branch
      %24 = sbr.rel (0) target = $region21
    $region20: #{tpu_custom_call.1} parent=1 // pred_region
      _
    $region21: #{tpu_custom_call.1} parent=1 // pred_fallthru
      _
    // Predicated region
    $region22: #{tpu_custom_call.1} parent=1 // pred_check
      _
    $region23: #{tpu_custom_call.1} parent=1 // pred_check_branch
      %26 = sbr.rel (0) target = $region25
    $region24: #{tpu_custom_call.1} parent=1 // pred_region
      _
    $region25: #{tpu_custom_call.1} parent=1 // pred_fallthru
      _
    // Predicated region
    $region26: #{tpu_custom_call.1} parent=1 // pred_check
      _
    $region27: #{tpu_custom_call.1} parent=1 // pred_check_branch
      %28 = sbr.rel (0) target = $region29
    $region28: #{tpu_custom_call.1} parent=1 // pred_region
      _
    $region29: #{tpu_custom_call.1} parent=1 // pred_fallthru
      _
    // Predicated region
    $region30: #{tpu_custom_call.1} parent=1 // pred_check
      _
    $region31: #{tpu_custom_call.1} parent=1 // pred_check_branch
      %30 = sbr.rel (0) target = $region33
    $region32: #{tpu_custom_call.1} parent=1 // pred_region
      _
    $region33: #{tpu_custom_call.1} parent=1 // pred_fallthru
      _
    // Predicated region
    $region34: #{tpu_custom_call.1} parent=1 // pred_check
      _
    $region35: #{tpu_custom_call.1} parent=1 // pred_check_branch
      %32 = sbr.rel (0) target = $region37
    $region36: #{tpu_custom_call.1} parent=1 // pred_region
      _
    $region37: #{tpu_custom_call.1} parent=1 // pred_fallthru
      _
    %v33 = vld [vmem:[%s1] sm:$0xff]
    %v34 = vld [vmem:[%s1 + $0x8] sm:$0xff]
    %v35 = vld [vmem:[%s0] sm:$0xff]
    %v36 = vld [vmem:[%s0 + $0x8] sm:$0xff]
    %v37 = vld [vmem:[%s0 + $0x10] sm:$0xff]
    %v38 = vld [vmem:[%s0 + $0x18] sm:$0xff]
    %v39 = vld [vmem:[%s0 + $0x20] sm:$0xff]
    %v40 = vld [vmem:[%s0 + $0x28] sm:$0xff]
    %v41 = vld [vmem:[%s0 + $0x30] sm:$0xff]
    %v42 = vld [vmem:[%s0 + $0x38] sm:$0xff]
    %v43 = vld [vmem:[%s0 + $0x40] sm:$0xff]
    %v44 = vld [vmem:[%s0 + $0x48] sm:$0xff]
    %v45 = vld [vmem:[%s0 + $0x50] sm:$0xff]
    %v46 = vld [vmem:[%s0 + $0x58] sm:$0xff]
    %v47 = vld [vmem:[%s0 + $0x60] sm:$0xff]
    %v48 = vld [vmem:[%s0 + $0x68] sm:$0xff]
    %v49 = vld [vmem:[%s0 + $0x70] sm:$0xff]
    %v50 = vld [vmem:[%s0 + $0x78] sm:$0xff]
    %v51 = vld [vmem:[%s2] sm:$0xff]
    %v52 = vld [vmem:[%s2 + $0x8] sm:$0xff]
    %54 = vset.pattern.permute.xlu0 0
    %55 = vperm.xlu0 %54, %v51
    %v56 = vpop.permute.xlu0 %55
    %59 = vset.pattern.permute.xlu0 0
    %60 = vperm.xlu0 %59, %v52
    %v61 = vpop.permute.xlu0 %60
    %vm63 = vcmask 334848
    %v65 = vsel %vm63, %v33, 0
    %v68 = vsel %vm63, %v34, 0
    %v71 = vsel %vm63, %v35, 0
    %v74 = vsel %vm63, %v36, 0
    %v77 = vsel %vm63, %v37, 0
    %v80 = vsel %vm63, %v38, 0
    %v83 = vsel %vm63, %v39, 0
    %v86 = vsel %vm63, %v40, 0
    %v89 = vsel %vm63, %v41, 0
    %v92 = vsel %vm63, %v42, 0
    %v95 = vsel %vm63, %v43, 0
    %v98 = vsel %vm63, %v44, 0
    %v101 = vsel %vm63, %v45, 0
    %v104 = vsel %vm63, %v46, 0
    %v107 = vsel %vm63, %v47, 0
    %v110 = vsel %vm63, %v48, 0
    %v113 = vsel %vm63, %v49, 0
    %v116 = vsel %vm63, %v50, 0
    %118 = vmatprep.subr.mxu0 0.0
    %119 = vmatpush1.xpose.msra.mxu0 %v116
    %120 = vmatprep.subr.mxu0 0.0
    %121 = vmatpush1.xpose.msra.mxu0 %v113
    %122 = vmatprep.subr.mxu0 0.0
    %123 = vmatpush1.xpose.msra.mxu0 %v110
    %124 = vmatprep.subr.mxu0 0.0
    %125 = vmatpush1.xpose.msra.mxu0 %v107
    %126 = vmatprep.subr.mxu0 0.0
    %127 = vmatpush1.xpose.msra.mxu0 %v104
    %128 = vmatprep.subr.mxu0 0.0
    %129 = vmatpush1.xpose.msra.mxu0 %v101
    %130 = vmatprep.subr.mxu0 0.0
    %131 = vmatpush1.xpose.msra.mxu0 %v98
    %132 = vmatprep.subr.mxu0 0.0
    %133 = vmatpush1.xpose.msra.mxu0 %v95
    %134 = vmatprep.subr.mxu0 0.0
    %135 = vmatpush1.xpose.msra.mxu0 %v92
    %136 = vmatprep.subr.mxu0 0.0
    %137 = vmatpush1.xpose.msra.mxu0 %v89
    %138 = vmatprep.subr.mxu0 0.0
    %139 = vmatpush1.xpose.msra.mxu0 %v86
    %140 = vmatprep.subr.mxu0 0.0
    %141 = vmatpush1.xpose.msra.mxu0 %v83
    %142 = vmatprep.subr.mxu0 0.0
    %143 = vmatpush1.xpose.msra.mxu0 %v80
    %144 = vmatprep.subr.mxu0 0.0
    %145 = vmatpush1.xpose.msra.mxu0 %v77
    %146 = vmatprep.subr.mxu0 0.0
    %147 = vmatpush1.xpose.msra.mxu0 %v74
    %148 = vmatprep.subr.mxu0 0.0
    %149 = vmatpush1.xpose.msra.mxu0 %v71
    %150 = vmatprep.subr.mxu0 0.0
    %151 = vmatpush2.xpose.msra.mxu0 0.0
    %152 = vmatprep.subr.mxu0 0.0
    %153 = vmatpush2.xpose.msra.mxu0 0.0
    %154 = vmatprep.subr.mxu0 0.0
    %155 = vmatpush2.xpose.msra.mxu0 0.0
    %156 = vmatprep.subr.mxu0 0.0
    %157 = vmatpush2.xpose.msra.mxu0 0.0
    %158 = vmatprep.subr.mxu0 0.0
    %159 = vmatpush2.xpose.msra.mxu0 0.0
    %160 = vmatprep.subr.mxu0 0.0
    %161 = vmatpush2.xpose.msra.mxu0 0.0
    %162 = vmatprep.subr.mxu0 0.0
    %163 = vmatpush2.xpose.msra.mxu0 0.0
    %164 = vmatprep.subr.mxu0 0.0
    %165 = vmatpush2.xpose.msra.mxu0 0.0
    %166 = vmatprep.subr.mxu0 0.0
    %167 = vmatpush2.xpose.msra.mxu0 0.0
    %168 = vmatprep.subr.mxu0 0.0
    %169 = vmatpush2.xpose.msra.mxu0 0.0
    %170 = vmatprep.subr.mxu0 0.0
    %171 = vmatpush2.xpose.msra.mxu0 0.0
    %172 = vmatprep.subr.mxu0 0.0
    %173 = vmatpush2.xpose.msra.mxu0 0.0
    %174 = vmatprep.subr.mxu0 0.0
    %175 = vmatpush2.xpose.msra.mxu0 0.0
    %176 = vmatprep.subr.mxu0 0.0
    %177 = vmatpush2.xpose.msra.mxu0 0.0
    %178 = vmatprep.subr.mxu0 0.0
    %179 = vmatpush2.xpose.msra.mxu0 0.0
    %180 = vmatprep.subr.mxu0 0.0
    %181 = vmatpush2.xpose.msra.mxu0 0.0
    %182 = vmatprep.mubr.f32.mxu0 0.0
    %183 = vmatmul.mubr.f32.gmra.mxu0 %v65
    %v184 = vpop.f32.mrf.mxu0
    %v185 = vadd.f32 %v56, %v184
    %v186 = vpop.f32.mrf.mxu0
    %187 = vmatprep.mubr.f32.mxu0 0.0
    %188 = vmatmul.mubr.f32.gmra.mxu0 %v68
    %v189 = vpop.f32.mrf.mxu0
    %v190 = vadd.f32 %v61, %v189
    %v191 = vpop.f32.mrf.mxu0
    %192 = vdwg.mxu0
    %v193 = vmax.f32 %v185, 0.0
    %v194 = vmax.f32 %v190, 0.0
    %v195 = vld [vmem:[%s3] sm:$0xff]
    %v196 = vld [vmem:[%s3 + $0x8] sm:$0xff]
    %v197 = vld [vmem:[%s4] sm:$0xff]
    %v198 = vld [vmem:[%s4 + $0x8] sm:$0xff]
    %200 = vset.pattern.permute.xlu0 0
    %201 = vperm.xlu0 %200, %v197
    %v202 = vpop.permute.xlu0 %201
    %205 = vset.pattern.permute.xlu0 0
    %206 = vperm.xlu0 %205, %v198
    %v207 = vpop.permute.xlu0 %206
    %vm209 = vcmask 130048
    %v211 = vsel %vm209, %v195, 0
    %v214 = vsel %vm209, %v196, 0
    %216 = vmatprep.subr.mxu0 0.0
    %217 = vmatpush1.msra.mxu0 0.0
    %218 = vmatprep.subr.mxu0 0.0
    %219 = vmatpush1.msra.mxu0 0.0
    %220 = vmatprep.subr.mxu0 0.0
    %221 = vmatpush1.msra.mxu0 0.0
    %222 = vmatprep.subr.mxu0 0.0
    %223 = vmatpush1.msra.mxu0 0.0
    %224 = vmatprep.subr.mxu0 0.0
    %225 = vmatpush1.msra.mxu0 0.0
    %226 = vmatprep.subr.mxu0 0.0
    %227 = vmatpush1.msra.mxu0 0.0
    %228 = vmatprep.subr.mxu0 0.0
    %229 = vmatpush1.msra.mxu0 0.0
    %230 = vmatprep.subr.mxu0 0.0
    %231 = vmatpush1.msra.mxu0 0.0
    %232 = vmatprep.subr.mxu0 0.0
    %233 = vmatpush1.msra.mxu0 0.0
    %234 = vmatprep.subr.mxu0 0.0
    %235 = vmatpush1.msra.mxu0 0.0
    %236 = vmatprep.subr.mxu0 0.0
    %237 = vmatpush1.msra.mxu0 0.0
    %238 = vmatprep.subr.mxu0 0.0
    %239 = vmatpush1.msra.mxu0 0.0
    %240 = vmatprep.subr.mxu0 0.0
    %241 = vmatpush1.msra.mxu0 0.0
    %242 = vmatprep.subr.mxu0 0.0
    %243 = vmatpush1.msra.mxu0 0.0
    %244 = vmatprep.subr.mxu0 0.0
    %245 = vmatpush1.msra.mxu0 %v194
    %246 = vmatprep.subr.mxu0 0.0
    %247 = vmatpush1.msra.mxu0 %v193
    %248 = vmatprep.subr.mxu0 0.0
    %249 = vmatpush2.msra.mxu0 0.0
    %250 = vmatprep.subr.mxu0 0.0
    %251 = vmatpush2.msra.mxu0 0.0
    %252 = vmatprep.subr.mxu0 0.0
    %253 = vmatpush2.msra.mxu0 0.0
    %254 = vmatprep.subr.mxu0 0.0
    %255 = vmatpush2.msra.mxu0 0.0
    %256 = vmatprep.subr.mxu0 0.0
    %257 = vmatpush2.msra.mxu0 0.0
    %258 = vmatprep.subr.mxu0 0.0
    %259 = vmatpush2.msra.mxu0 0.0
    %260 = vmatprep.subr.mxu0 0.0
    %261 = vmatpush2.msra.mxu0 0.0
    %262 = vmatprep.subr.mxu0 0.0
    %263 = vmatpush2.msra.mxu0 0.0
    %264 = vmatprep.subr.mxu0 0.0
    %265 = vmatpush2.msra.mxu0 0.0
    %266 = vmatprep.subr.mxu0 0.0
    %267 = vmatpush2.msra.mxu0 0.0
    %268 = vmatprep.subr.mxu0 0.0
    %269 = vmatpush2.msra.mxu0 0.0
    %270 = vmatprep.subr.mxu0 0.0
    %271 = vmatpush2.msra.mxu0 0.0
    %272 = vmatprep.subr.mxu0 0.0
    %273 = vmatpush2.msra.mxu0 0.0
    %274 = vmatprep.subr.mxu0 0.0
    %275 = vmatpush2.msra.mxu0 0.0
    %276 = vmatprep.subr.mxu0 0.0
    %277 = vmatpush2.msra.mxu0 0.0
    %278 = vmatprep.subr.mxu0 0.0
    %279 = vmatpush2.msra.mxu0 0.0
    %280 = vmatprep.mubr.f32.mxu0 0.0
    %281 = vmatmul.mubr.f32.gmra.mxu0 %v211
    %v282 = vpop.f32.mrf.mxu0
    %v283 = vadd.f32 %v202, %v282
    %v284 = vpop.f32.mrf.mxu0
    %285 = vmatprep.mubr.f32.mxu0 0.0
    %286 = vmatmul.mubr.f32.gmra.mxu0 %v214
    %v287 = vpop.f32.mrf.mxu0
    %v288 = vadd.f32 %v207, %v287
    %v289 = vpop.f32.mrf.mxu0
    %290 = vdwg.mxu0
    %v291 = vmax.f32 %v283, 0.0
    %v292 = vmax.f32 %v288, 0.0
    %v293 = vld [vmem:[%s5] sm:$0xff]
    %v294 = vld [vmem:[%s6] sm:$0xff]
    %296 = vset.pattern.permute.xlu0 0
    %297 = vperm.xlu0 %296, %v294
    %v298 = vpop.permute.xlu0 %297
    %v301 = vsel %vm209, %v293, 0
    %303 = vmatprep.subr.mxu0 0.0
    %304 = vmatpush1.msra.mxu0 0.0
    %305 = vmatprep.subr.mxu0 0.0
    %306 = vmatpush1.msra.mxu0 0.0
    %307 = vmatprep.subr.mxu0 0.0
    %308 = vmatpush1.msra.mxu0 0.0
    %309 = vmatprep.subr.mxu0 0.0
    %310 = vmatpush1.msra.mxu0 0.0
    %311 = vmatprep.subr.mxu0 0.0
    %312 = vmatpush1.msra.mxu0 0.0
    %313 = vmatprep.subr.mxu0 0.0
    %314 = vmatpush1.msra.mxu0 0.0
    %315 = vmatprep.subr.mxu0 0.0
    %316 = vmatpush1.msra.mxu0 0.0
    %317 = vmatprep.subr.mxu0 0.0
    %318 = vmatpush1.msra.mxu0 0.0
    %319 = vmatprep.subr.mxu0 0.0
    %320 = vmatpush1.msra.mxu0 0.0
    %321 = vmatprep.subr.mxu0 0.0
    %322 = vmatpush1.msra.mxu0 0.0
    %323 = vmatprep.subr.mxu0 0.0
    %324 = vmatpush1.msra.mxu0 0.0
    %325 = vmatprep.subr.mxu0 0.0
    %326 = vmatpush1.msra.mxu0 0.0
    %327 = vmatprep.subr.mxu0 0.0
    %328 = vmatpush1.msra.mxu0 0.0
    %329 = vmatprep.subr.mxu0 0.0
    %330 = vmatpush1.msra.mxu0 0.0
    %331 = vmatprep.subr.mxu0 0.0
    %332 = vmatpush1.msra.mxu0 %v292
    %333 = vmatprep.subr.mxu0 0.0
    %334 = vmatpush1.msra.mxu0 %v291
    %335 = vmatprep.subr.mxu0 0.0
    %336 = vmatpush2.msra.mxu0 0.0
    %337 = vmatprep.subr.mxu0 0.0
    %338 = vmatpush2.msra.mxu0 0.0
    %339 = vmatprep.subr.mxu0 0.0
    %340 = vmatpush2.msra.mxu0 0.0
    %341 = vmatprep.subr.mxu0 0.0
    %342 = vmatpush2.msra.mxu0 0.0
    %343 = vmatprep.subr.mxu0 0.0
    %344 = vmatpush2.msra.mxu0 0.0
    %345 = vmatprep.subr.mxu0 0.0
    %346 = vmatpush2.msra.mxu0 0.0
    %347 = vmatprep.subr.mxu0 0.0
    %348 = vmatpush2.msra.mxu0 0.0
    %349 = vmatprep.subr.mxu0 0.0
    %350 = vmatpush2.msra.mxu0 0.0
    %351 = vmatprep.subr.mxu0 0.0
    %352 = vmatpush2.msra.mxu0 0.0
    %353 = vmatprep.subr.mxu0 0.0
    %354 = vmatpush2.msra.mxu0 0.0
    %355 = vmatprep.subr.mxu0 0.0
    %356 = vmatpush2.msra.mxu0 0.0
    %357 = vmatprep.subr.mxu0 0.0
    %358 = vmatpush2.msra.mxu0 0.0
    %359 = vmatprep.subr.mxu0 0.0
    %360 = vmatpush2.msra.mxu0 0.0
    %361 = vmatprep.subr.mxu0 0.0
    %362 = vmatpush2.msra.mxu0 0.0
    %363 = vmatprep.subr.mxu0 0.0
    %364 = vmatpush2.msra.mxu0 0.0
    %365 = vmatprep.subr.mxu0 0.0
    %366 = vmatpush2.msra.mxu0 0.0
    %367 = vmatprep.mubr.f32.mxu0 0.0
    %368 = vmatmul.mubr.f32.gmra.mxu0 %v301
    %v369 = vpop.f32.mrf.mxu0
    %v370 = vadd.f32 %v298, %v369
    %v371 = vpop.f32.mrf.mxu0
    %372 = vdwg.mxu0
    %v373 = vmax.f32 %v370, 0.0
    %v374 = vld [vmem:[%s7] sm:$0x3]
    %v375 = vld [vmem:[%s8] sm:$0x3]
    %377 = vset.pattern.permute.xlu0 0
    %378 = vperm.xlu0 %377, %v375
    %v379 = vpop.permute.xlu0 %378
    %vm381 = vcmask 64512
    %v383 = vsel %vm381, %v374, 0
    %385 = vmatprep.subr.mxu0 0.0
    %386 = vmatpush1.msra.mxu0 0.0
    %387 = vmatprep.subr.mxu0 0.0
    %388 = vmatpush1.msra.mxu0 0.0
    %389 = vmatprep.subr.mxu0 0.0
    %390 = vmatpush1.msra.mxu0 0.0
    %391 = vmatprep.subr.mxu0 0.0
    %392 = vmatpush1.msra.mxu0 0.0
    %393 = vmatprep.subr.mxu0 0.0
    %394 = vmatpush1.msra.mxu0 0.0
    %395 = vmatprep.subr.mxu0 0.0
    %396 = vmatpush1.msra.mxu0 0.0
    %397 = vmatprep.subr.mxu0 0.0
    %398 = vmatpush1.msra.mxu0 0.0
    %399 = vmatprep.subr.mxu0 0.0
    %400 = vmatpush1.msra.mxu0 0.0
    %401 = vmatprep.subr.mxu0 0.0
    %402 = vmatpush1.msra.mxu0 0.0
    %403 = vmatprep.subr.mxu0 0.0
    %404 = vmatpush1.msra.mxu0 0.0
    %405 = vmatprep.subr.mxu0 0.0
    %406 = vmatpush1.msra.mxu0 0.0
    %407 = vmatprep.subr.mxu0 0.0
    %408 = vmatpush1.msra.mxu0 0.0
    %409 = vmatprep.subr.mxu0 0.0
    %410 = vmatpush1.msra.mxu0 0.0
    %411 = vmatprep.subr.mxu0 0.0
    %412 = vmatpush1.msra.mxu0 0.0
    %413 = vmatprep.subr.mxu0 0.0
    %414 = vmatpush1.msra.mxu0 0.0
    %415 = vmatprep.subr.mxu0 0.0
    %416 = vmatpush1.msra.mxu0 %v373
    %417 = vmatprep.subr.mxu0 0.0
    %418 = vmatpush2.msra.mxu0 0.0
    %419 = vmatprep.subr.mxu0 0.0
    %420 = vmatpush2.msra.mxu0 0.0
    %421 = vmatprep.subr.mxu0 0.0
    %422 = vmatpush2.msra.mxu0 0.0
    %423 = vmatprep.subr.mxu0 0.0
    %424 = vmatpush2.msra.mxu0 0.0
    %425 = vmatprep.subr.mxu0 0.0
    %426 = vmatpush2.msra.mxu0 0.0
    %427 = vmatprep.subr.mxu0 0.0
    %428 = vmatpush2.msra.mxu0 0.0
    %429 = vmatprep.subr.mxu0 0.0
    %430 = vmatpush2.msra.mxu0 0.0
    %431 = vmatprep.subr.mxu0 0.0
    %432 = vmatpush2.msra.mxu0 0.0
    %433 = vmatprep.subr.mxu0 0.0
    %434 = vmatpush2.msra.mxu0 0.0
    %435 = vmatprep.subr.mxu0 0.0
    %436 = vmatpush2.msra.mxu0 0.0
    %437 = vmatprep.subr.mxu0 0.0
    %438 = vmatpush2.msra.mxu0 0.0
    %439 = vmatprep.subr.mxu0 0.0
    %440 = vmatpush2.msra.mxu0 0.0
    %441 = vmatprep.subr.mxu0 0.0
    %442 = vmatpush2.msra.mxu0 0.0
    %443 = vmatprep.subr.mxu0 0.0
    %444 = vmatpush2.msra.mxu0 0.0
    %445 = vmatprep.subr.mxu0 0.0
    %446 = vmatpush2.msra.mxu0 0.0
    %447 = vmatprep.subr.mxu0 0.0
    %448 = vmatpush2.msra.mxu0 0.0
    %449 = vmatprep.mubr.f32.mxu0 0.0
    %450 = vmatmul.mubr.f32.gmra.mxu0 %v383
    %v451 = vpop.f32.mrf.mxu0
    %v452 = vadd.f32 %v379, %v451
    %v453 = vpop.f32.mrf.mxu0
    %454 = vdwg.mxu0
    %v455 = vmax.f32 %v452, 0.0
    %v457 = vrot.slane %v455, 1
    %v459 = vmax.f32 %v455, %v457
    %v460 = vsub.f32 %v455, %v459
    %v461 = vmul.f32 %v460, 1.442695
    %v462 = vpow.pop %v461
    %v464 = vrot.slane %v459, 7
    %v466 = vsub.f32 %v455, %v464
    %v467 = vmul.f32 %v466, 1.442695
    %v468 = vpow.pop %v467
    %v470 = vrot.slane %v468, 1
    %v472 = vadd.f32 %v462, %v470
    %v473 = vrcp.pop %v472
    %v474 = vmul.f32 %v462, %v473
    %v476 = vrot.slane %v473, 7
    %v478 = vmul.f32 %v468, %v476
    %vm479 = vcmask 1040384
    %v480 = vsel %vm479, %v474, %v478
    %481 = vst [vmem:[#allocation2] sm:$0x3] %v480
    // Predicated region
    $region38: #{tpu_custom_call.1} parent=1 // pred_check
      _
    $region39: #{tpu_custom_call.1} parent=1 // pred_check_branch
      %483 = sbr.rel (0) target = $region41
    $region40: #{tpu_custom_call.1} parent=1 // pred_region
      %s485 = ssub.s32 32, 32
      %486 = vsyncadd [#allocation3], %s485
      %s488 = sshll.u32 [#allocation2], 4
      %s489 = int_to_ptr.vmem [resolvable:$true] %s488
      %491 = dma.vmem_to_hbm [thread:$0]  %s489, 32, %s9, [#allocation3]
    $region41: #{tpu_custom_call.1} parent=1 // pred_fallthru
      _
    // Predicated region
    $region42: #{tpu_custom_call.1} parent=1 // pred_check
      _
    $region43: #{tpu_custom_call.1} parent=1 // pred_check_branch
      %493 = sbr.rel (0) target = $region45
    $region44: #{tpu_custom_call.1} parent=1 // pred_region
      %494 = dma.done [#allocation3], 32
    $region45: #{tpu_custom_call.1} parent=1 // pred_fallthru
      _
    %495 = vsyncpa [#allocation3], 1

</llo_original>
